<compile_context>
chip_gen: v7x
topology: tpu7x:2x2x1
jax: 0.10.0
libtpu: 0.0.40
codegen_flags: <defaults>
</compile_context>

<pallas_src>
import functools

import jax
import jax.numpy as jnp
import numpy as np
from jax.experimental import pallas as pl
from jax.experimental.pallas import tpu as pltpu  # noqa: F401  (TPU backend)

NEG_SLOPE = 0.2  # LeakyReLU(0.2), as in the module


def _round_up(x, m):
    return -(-x // m) * m


# ----------------------------- fused Pallas kernel ---------------------------
def _fused_generator_kernel(x_ref, w_ref, o_ref, *, layer_meta):
    """Whole Generator1D forward in one kernel.

    layer_meta: static tuple of (row_offset, k_rows) per layer into w_ref.
      w_ref[off : off+k, :] is the (zero-padded) weight of that layer and
      w_ref[off+k, :] is its bias row.  Every layer except the last is followed
      by LeakyReLU(0.2).  Zero-padded lanes stay exactly 0 through the whole
      stack (zero weight cols + zero bias cols + leaky(0) == 0), so only the
      final crop in the wrapper is needed.
    """
    x = x_ref[...].astype(jnp.float32)
    n_layers = len(layer_meta)
    # Static Python loop → fully unrolled straight-line code (do NOT convert to
    # a traced loop; per-layer compute is tiny).
    for i, (off, k) in enumerate(layer_meta):
        w = w_ref[pl.ds(off, k), :]          # static slice of the VMEM slab
        b = w_ref[pl.ds(off + k, 1), :]      # bias row (1, n_slab)
        # f32 in / f32 accumulate.  For large batches on v5e/v6e/v7x one could
        # cast x/w to bf16 here (MXU takes bf16 on all gens) with
        # preferred_element_type=f32; not worth it at latency-bound sizes.
        y = jnp.dot(x, w, preferred_element_type=jnp.float32) + b
        x = jnp.where(y > 0, y, NEG_SLOPE * y) if i < n_layers - 1 else y
    o_ref[...] = x.astype(o_ref.dtype)


# --------------------------- parameter creation -------------------------------
def _init_linear(key, fan_in, fan_out, dtype=jnp.float32):
    # PyTorch nn.Linear default init: U(-1/sqrt(fan_in), 1/sqrt(fan_in)).
    kw, kb = jax.random.split(key)
    bound = 1.0 / np.sqrt(fan_in)
    w = jax.random.uniform(kw, (fan_in, fan_out), dtype, -bound, bound)
    b = jax.random.uniform(kb, (1, fan_out), dtype, -bound, bound)
    return w, b


def init_generator1d_params(key, lmk_len, shp_len, hidden_channel):
    keys = jax.random.split(key, 3 + len(hidden_channel))
    params = {}
    params["lmk_fc"] = _init_linear(keys[0], lmk_len, hidden_channel[0] // 2)
    params["shp_fc"] = _init_linear(keys[1], shp_len, hidden_channel[0] // 2)
    params["fc"] = []
    for i in range(1, len(hidden_channel)):
        params["fc"].append(
            _init_linear(keys[1 + i], hidden_channel[i - 1], hidden_channel[i])
        )
    params["out_fc"] = _init_linear(keys[-1], hidden_channel[-1], shp_len)
    return params


# ------------------------ one-time parameter packing --------------------------
def _pack_generator1d_params(params):
    """Host-side (numpy) packing of all layers into one pre-padded f32 slab.

    Layer 0 fuses lmk_fc and shp_fc as a block-diagonal weight so the kernel
    consumes the concatenated [lmk | shp] input with ONE matmul; its output is
    already [lmk_h | shp_h], so torch.cat is free.  Subsequent layers (fc stack
    + out_fc) are stored with their input dim padded to the slab lane width so
    no activation re-slicing is needed between layers.  Each layer block starts
    on an 8-row (sublane) aligned offset; the lane width is a multiple of 128
    so the final store is unmasked and lane-dense.
    """
    wl, bl = params["lmk_fc"]          # (lmk_len, h0/2), (1, h0/2)
    ws, bs = params["shp_fc"]          # (shp_len, h0/2), (1, h0/2)
    chain = list(params["fc"]) + [params["out_fc"]]

    lmk_len, h_half = int(wl.shape[0]), int(wl.shape[1])
    shp_len = int(ws.shape[0])
    d_in = lmk_len + shp_len
    h0 = 2 * h_half
    n_out = int(chain[-1][0].shape[1])

    widths = [h0] + [int(w.shape[1]) for (w, _) in chain]
    n_slab = _round_up(max(widths), 128)

    blocks, layer_meta, row = [], [], 0

    def add_block(w_np, b_np, k_rows):
        nonlocal row
        blk_rows = _round_up(k_rows + 1, 8)               # 8-aligned block start
        blk = np.zeros((blk_rows, n_slab), np.float32)
        blk[: w_np.shape[0], : w_np.shape[1]] = w_np
        blk[k_rows, : b_np.size] = b_np.reshape(-1)
        blocks.append(blk)
        layer_meta.append((row, k_rows))
        row += blk_rows

    # Layer 0: block-diag [[Wl, 0], [0, Ws]], bias [bl | bs].
    w0 = np.zeros((d_in, h0), np.float32)
    w0[:lmk_len, :h_half] = np.asarray(wl, np.float32)
    w0[lmk_len:, h_half:] = np.asarray(ws, np.float32)
    b0 = np.concatenate([np.asarray(bl, np.float32).reshape(-1),
                         np.asarray(bs, np.float32).reshape(-1)])
    add_block(w0, b0, d_in)

    # Hidden fc layers + out_fc: input dim padded (rows) to n_slab.
    for (w, b) in chain:
        add_block(np.asarray(w, np.float32), np.asarray(b, np.float32), n_slab)

    slab = np.concatenate(blocks, axis=0)
    return slab, tuple(layer_meta), n_slab, n_out


# ------------------------------- forward --------------------------------------
def make_generator1d_forward(params):
    slab_np, layer_meta, n_slab, n_out = _pack_generator1d_params(params)
    slab = jnp.asarray(slab_np)          # device-resident packed parameters
    slab_shape = slab_np.shape
    flops_per_row = 2 * sum(k for (_, k) in layer_meta) * n_slab

    kernel = functools.partial(_fused_generator_kernel, layer_meta=layer_meta)

    @jax.jit
    def forward(slab, lmk, shp):
        # Concatenate the RAW inputs (the two branch fc's are block-diagonalized
        # into the first packed layer, so their outputs never need a concat).
        x = jnp.concatenate([lmk, shp], axis=1).astype(jnp.float32)
        B = x.shape[0]
        bytes_accessed = 4 * (x.size + slab.size + B * n_slab)
        # Single grid-less invocation: everything (< 0.25 MB) lives in VMEM as
        # full-array blocks (exempt from the (8,128) rule).  If batch ever grows
        # into the hundreds+, add a batch grid axis tiled at >=512 rows with
        # dimension_semantics=("parallel",) (2x on v7x's two TensorCores) and
        # optionally bf16 matmul inputs.
        out = pl.pallas_call(
            kernel,
            out_shape=jax.ShapeDtypeStruct((B, n_slab), jnp.float32),
            in_specs=[pl.BlockSpec(x.shape, lambda: (0, 0)),
                      pl.BlockSpec(slab_shape, lambda: (0, 0))],
            out_specs=pl.BlockSpec((B, n_slab), lambda: (0, 0)),
            cost_estimate=pl.CostEstimate(
                flops=B * flops_per_row, transcendentals=0,
                bytes_accessed=bytes_accessed),
        )(x, slab)
        # Crop zero-padded output lanes (padded weight/bias columns are zero).
        return out[:, :n_out]

    return functools.partial(forward, slab)


# --------------------------- pure-JAX reference --------------------------------
def _ref_forward(params, lmk, shp):
    def lin(x, wb, act):
        y = x @ wb[0] + wb[1]
        return jnp.where(y > 0, y, NEG_SLOPE * y) if act else y

    lmk_h = lin(lmk, params["lmk_fc"], True)
    shp_h = lin(shp, params["shp_fc"], True)
    x = jnp.concatenate([lmk_h, shp_h], axis=1)
    for wb in params["fc"]:
        x = lin(x, wb, True)
    return lin(x, params["out_fc"], False)


# --------------------------------- main ----------------------------------------
if __name__ == "__main__":
    # Small synthetic config (model_config equivalent).
    lmk_len = 16
    shp_len = 8
    hidden_channel = [32, 64, 32]
    batch = 2

    key = jax.random.PRNGKey(0)
    kp, kl, ks = jax.random.split(key, 3)

    params = init_generator1d_params(kp, lmk_len, shp_len, hidden_channel)
    lmk = jax.random.normal(kl, (batch, lmk_len), jnp.float32)
    shp = jax.random.normal(ks, (batch, shp_len), jnp.float32)

    fwd = make_generator1d_forward(params)
    out = jax.block_until_ready(fwd(lmk, shp))

    ref = _ref_forward(params, lmk, shp)
    assert out.shape == (batch, shp_len)
    np.testing.assert_allclose(np.asarray(out), np.asarray(ref), rtol=1e-5, atol=1e-5)

    print("KERNEL_OK")
</pallas_src>

<mosaic_0001>
module attributes {stable_mosaic.version = 11 : i64} {
  func.func @_fused_generator_kernel(%arg0: memref<2x24xf32, #tpu.memory_space<vmem>>, %arg1: memref<440x128xf32, #tpu.memory_space<vmem>>, %arg2: memref<2x128xf32, #tpu.memory_space<vmem>>) attributes {dimension_semantics = [], scalar_prefetch = 0 : i64, scratch_operands = 0 : i64, tpu.core_type = #tpu.core_type<tc>} {
    %c0 = arith.constant 0 : index
    %c0_0 = arith.constant 0 : index
    %0 = vector.load %arg0[%c0, %c0_0] : memref<2x24xf32, #tpu.memory_space<vmem>>, vector<2x24xf32>
    %c0_1 = arith.constant 0 : index
    %c0_2 = arith.constant 0 : index
    %1 = vector.load %arg1[%c0_1, %c0_2] : memref<440x128xf32, #tpu.memory_space<vmem>>, vector<24x128xf32>
    %c24 = arith.constant 24 : index
    %c0_3 = arith.constant 0 : index
    %2 = vector.load %arg1[%c24, %c0_3] : memref<440x128xf32, #tpu.memory_space<vmem>>, vector<1x128xf32>
    %cst = arith.constant dense<0.000000e+00> : vector<2x128xf32>
    %3 = tpu.matmul %0, %1, %cst {dimension_numbers = #tpu.dot_dimension_numbers<[1], [0], [0], [1], [0, 0, 1, 1], [], []>} : vector<2x24xf32>, vector<24x128xf32>, vector<2x128xf32> -> vector<2x128xf32>
    %4 = vector.broadcast %2 : vector<1x128xf32> to vector<2x128xf32>
    %5 = arith.addf %3, %4 : vector<2x128xf32>
    %cst_4 = arith.constant 0.000000e+00 : f32
    %6 = vector.broadcast %cst_4 : f32 to vector<2x128xf32>
    %7 = arith.cmpf ogt, %5, %6 : vector<2x128xf32>
    %cst_5 = arith.constant 2.000000e-01 : f32
    %8 = vector.broadcast %cst_5 : f32 to vector<2x128xf32>
    %9 = arith.mulf %8, %5 : vector<2x128xf32>
    %10 = arith.select %7, %5, %9 : vector<2x128xi1>, vector<2x128xf32>
    %c32 = arith.constant 32 : index
    %c0_6 = arith.constant 0 : index
    %11 = vector.load %arg1[%c32, %c0_6] : memref<440x128xf32, #tpu.memory_space<vmem>>, vector<128x128xf32>
    %c160 = arith.constant 160 : index
    %c0_7 = arith.constant 0 : index
    %12 = vector.load %arg1[%c160, %c0_7] : memref<440x128xf32, #tpu.memory_space<vmem>>, vector<1x128xf32>
    %cst_8 = arith.constant dense<0.000000e+00> : vector<2x128xf32>
    %13 = tpu.matmul %10, %11, %cst_8 {dimension_numbers = #tpu.dot_dimension_numbers<[1], [0], [0], [1], [0, 0, 1, 1], [], []>} : vector<2x128xf32>, vector<128x128xf32>, vector<2x128xf32> -> vector<2x128xf32>
    %14 = vector.broadcast %12 : vector<1x128xf32> to vector<2x128xf32>
    %15 = arith.addf %13, %14 : vector<2x128xf32>
    %cst_9 = arith.constant 0.000000e+00 : f32
    %16 = vector.broadcast %cst_9 : f32 to vector<2x128xf32>
    %17 = arith.cmpf ogt, %15, %16 : vector<2x128xf32>
    %cst_10 = arith.constant 2.000000e-01 : f32
    %18 = vector.broadcast %cst_10 : f32 to vector<2x128xf32>
    %19 = arith.mulf %18, %15 : vector<2x128xf32>
    %20 = arith.select %17, %15, %19 : vector<2x128xi1>, vector<2x128xf32>
    %c168 = arith.constant 168 : index
    %c0_11 = arith.constant 0 : index
    %21 = vector.load %arg1[%c168, %c0_11] : memref<440x128xf32, #tpu.memory_space<vmem>>, vector<128x128xf32>
    %c296 = arith.constant 296 : index
    %c0_12 = arith.constant 0 : index
    %22 = vector.load %arg1[%c296, %c0_12] : memref<440x128xf32, #tpu.memory_space<vmem>>, vector<1x128xf32>
    %cst_13 = arith.constant dense<0.000000e+00> : vector<2x128xf32>
    %23 = tpu.matmul %20, %21, %cst_13 {dimension_numbers = #tpu.dot_dimension_numbers<[1], [0], [0], [1], [0, 0, 1, 1], [], []>} : vector<2x128xf32>, vector<128x128xf32>, vector<2x128xf32> -> vector<2x128xf32>
    %24 = vector.broadcast %22 : vector<1x128xf32> to vector<2x128xf32>
    %25 = arith.addf %23, %24 : vector<2x128xf32>
    %cst_14 = arith.constant 0.000000e+00 : f32
    %26 = vector.broadcast %cst_14 : f32 to vector<2x128xf32>
    %27 = arith.cmpf ogt, %25, %26 : vector<2x128xf32>
    %cst_15 = arith.constant 2.000000e-01 : f32
    %28 = vector.broadcast %cst_15 : f32 to vector<2x128xf32>
    %29 = arith.mulf %28, %25 : vector<2x128xf32>
    %30 = arith.select %27, %25, %29 : vector<2x128xi1>, vector<2x128xf32>
    %c304 = arith.constant 304 : index
    %c0_16 = arith.constant 0 : index
    %31 = vector.load %arg1[%c304, %c0_16] : memref<440x128xf32, #tpu.memory_space<vmem>>, vector<128x128xf32>
    %c432 = arith.constant 432 : index
    %c0_17 = arith.constant 0 : index
    %32 = vector.load %arg1[%c432, %c0_17] : memref<440x128xf32, #tpu.memory_space<vmem>>, vector<1x128xf32>
    %cst_18 = arith.constant dense<0.000000e+00> : vector<2x128xf32>
    %33 = tpu.matmul %30, %31, %cst_18 {dimension_numbers = #tpu.dot_dimension_numbers<[1], [0], [0], [1], [0, 0, 1, 1], [], []>} : vector<2x128xf32>, vector<128x128xf32>, vector<2x128xf32> -> vector<2x128xf32>
    %34 = vector.broadcast %32 : vector<1x128xf32> to vector<2x128xf32>
    %35 = arith.addf %33, %34 : vector<2x128xf32>
    %c0_19 = arith.constant 0 : index
    %c0_20 = arith.constant 0 : index
    %36 = vector.load %arg2[%c0_19, %c0_20] : memref<2x128xf32, #tpu.memory_space<vmem>>, vector<2x128xf32>
    tpu.vector_store %arg2[%c0_19, %c0_20], %35 {strides = array<i32>} : memref<2x128xf32, #tpu.memory_space<vmem>>, vector<2x128xf32>,
    return
  }
}

</mosaic_0001>

<llo_original>
// kernel: forward.1
$region0: #{forward.1}
  #allocation0 [shape = 'u32[]', space=smem, size = 0x4, offset = 0x4, fixed_abs, tag = 'smem constant byte address 0x4 - core index']
  #allocation1 [shape = 'u32[144,128]{1,0:T(1,128)}', space=vmem, size = 0x12000, scoped, tag = 'internal scratch']
  %s0 = inlined_call_operand.vmem [shape: f32[2,24], index: 0, kind: input, shape index: {}]
  %s1 = inlined_call_operand.hbm [shape: f32[440,128], index: 1, kind: input, shape index: {}]
  %s2 = inlined_call_operand.hbm [shape: f32[2,128], index: 2, kind: output, shape index: {}]
  %s3 = sld [smem:[#allocation0]]
  $region22: #{forward.1} parent=0
    _
  %s5 = ssub.s32 1, %s3
  %s6 = scalar_select 0, %s5, %s3
  $region1: #{forward.1} parent=0
    #allocation2 [shape = 'u8[225280]{0}', space=vmem, size = 0x37000, scoped, tag = 'input window, operand 1, single buffered']
    #allocation3 [shape = 's32[1]{0}', space=sflag, size = 0x4, scoped, tag = 'scoped memory for forward.1']
    #allocation4 [shape = 's32[1]{0}', space=sflag, size = 0x4, scoped, tag = 'scoped memory for forward.1']
    #allocation5 [shape = 'u8[1024]{0}', space=vmem, size = 0x400, scoped, tag = 'output window, operand 0, single buffered']
    %7 = vsyncpa [#allocation3], 0
    %8 = vsyncpa [#allocation4], 0
    // Predicated region
    $region2: #{forward.1} parent=1 // pred_check
      _
    $region3: #{forward.1} parent=1 // pred_check_branch
      %10 = sbr.rel (0) target = $region5
    $region4: #{forward.1} parent=1 // pred_region
      _
    $region5: #{forward.1} parent=1 // pred_fallthru
      _
    // Predicated region
    $region6: #{forward.1} parent=1 // pred_check
      _
    $region7: #{forward.1} parent=1 // pred_check_branch
      %12 = sbr.rel (0) target = $region9
    $region8: #{forward.1} parent=1 // pred_region
      %s14 = ssub.s32 7040, 7040
      %15 = vsyncadd [#allocation3], %s14
      %s16 = sshll.u32 [#allocation2], 4
      %s17 = int_to_ptr.vmem [resolvable:$true] %s16
      %22 = dma.hbm_to_vmem [thread:$0]  %s1, 7040, %s17, [#allocation3], 128, 128, 8
    $region9: #{forward.1} parent=1 // pred_fallthru
      _
    // Predicated region
    $region10: #{forward.1} parent=1 // pred_check
      _
    $region11: #{forward.1} parent=1 // pred_check_branch
      %24 = sbr.rel (0) target = $region13
    $region12: #{forward.1} parent=1 // pred_region
      %25 = dma.done [#allocation3], 7040
    $region13: #{forward.1} parent=1 // pred_fallthru
      _
    %v26 = vld [vmem:[%s0] sm:$0x3]
    %v27 = vld [vmem:[#allocation2] sm:$0xff]
    %v28 = vld [vmem:[#allocation2 + $0x8] sm:$0xff]
    %v29 = vld [vmem:[#allocation2 + $0x10] sm:$0xff]
    %v30 = vld [vmem:[#allocation2 + $0x18] sm:$0x1]
    %v31 = vlaneseq
    %v32 = vshrl.u32 %v31, 7
    %v33 = vsub.s32 0, %v32
    %v34 = vrot.slane %v30, %v33
    %vm35 = vcmask 195584
    %v37 = vsel %vm35, %v26, 0
    %39 = vmatprep.subr.mxu0 0.0
    %40 = vmatpush1.msra.mxu0 %v27
    %41 = vmatprep.subr.mxu0 0.0
    %42 = vmatpush1.msra.mxu0 %v28
    %43 = vmatprep.subr.mxu0 0.0
    %44 = vmatpush1.msra.mxu0 %v29
    %45 = vmatprep.subr.mxu0 0.0
    %46 = vmatpush1.msra.mxu0 0.0
    %47 = vmatprep.subr.mxu0 0.0
    %48 = vmatpush1.msra.mxu0 0.0
    %49 = vmatprep.subr.mxu0 0.0
    %50 = vmatpush1.msra.mxu0 0.0
    %51 = vmatprep.subr.mxu0 0.0
    %52 = vmatpush1.msra.mxu0 0.0
    %53 = vmatprep.subr.mxu0 0.0
    %54 = vmatpush1.msra.mxu0 0.0
    %55 = vmatprep.subr.mxu0 0.0
    %56 = vmatpush1.msra.mxu0 0.0
    %57 = vmatprep.subr.mxu0 0.0
    %58 = vmatpush1.msra.mxu0 0.0
    %59 = vmatprep.subr.mxu0 0.0
    %60 = vmatpush1.msra.mxu0 0.0
    %61 = vmatprep.subr.mxu0 0.0
    %62 = vmatpush1.msra.mxu0 0.0
    %63 = vmatprep.subr.mxu0 0.0
    %64 = vmatpush1.msra.mxu0 0.0
    %65 = vmatprep.subr.mxu0 0.0
    %66 = vmatpush1.msra.mxu0 0.0
    %67 = vmatprep.subr.mxu0 0.0
    %68 = vmatpush1.msra.mxu0 0.0
    %69 = vmatprep.subr.mxu0 0.0
    %70 = vmatpush1.msra.mxu0 0.0
    %71 = vmatprep.subr.mxu0 0.0
    %72 = vmatpush1.msra.mxu0 0.0
    %73 = vmatprep.subr.mxu0 0.0
    %74 = vmatpush1.msra.mxu0 0.0
    %75 = vmatprep.subr.mxu0 0.0
    %76 = vmatpush1.msra.mxu0 0.0
    %77 = vmatprep.subr.mxu0 0.0
    %78 = vmatpush1.msra.mxu0 0.0
    %79 = vmatprep.subr.mxu0 0.0
    %80 = vmatpush1.msra.mxu0 0.0
    %81 = vmatprep.subr.mxu0 0.0
    %82 = vmatpush1.msra.mxu0 0.0
    %83 = vmatprep.subr.mxu0 0.0
    %84 = vmatpush1.msra.mxu0 0.0
    %85 = vmatprep.subr.mxu0 0.0
    %86 = vmatpush1.msra.mxu0 0.0
    %87 = vmatprep.subr.mxu0 0.0
    %88 = vmatpush1.msra.mxu0 0.0
    %89 = vmatprep.subr.mxu0 0.0
    %90 = vmatpush1.msra.mxu0 0.0
    %91 = vmatprep.subr.mxu0 0.0
    %92 = vmatpush1.msra.mxu0 0.0
    %93 = vmatprep.subr.mxu0 0.0
    %94 = vmatpush1.msra.mxu0 0.0
    %95 = vmatprep.subr.mxu0 0.0
    %96 = vmatpush1.msra.mxu0 0.0
    %97 = vmatprep.subr.mxu0 0.0
    %98 = vmatpush1.msra.mxu0 0.0
    %99 = vmatprep.subr.mxu0 0.0
    %100 = vmatpush1.msra.mxu0 0.0
    %101 = vmatprep.subr.mxu0 0.0
    %102 = vmatpush1.msra.mxu0 0.0
    %103 = vmatprep.mubr.f32.mxu0 0.0
    %104 = vmatmul.mubr.f32.gmra.mrb[0].mxu0 %v37
    %v105 = vpop.f32.mrb[0].mxu0
    %v106 = vadd.f32 %v34, %v105
    %v107 = vpop.f32.mrb[0].mxu0
    %108 = vdwg.mxu0
    %vm109 = vcmp.gt.f32.partialorder %v106, 0.0
    %v110 = vmul.f32 %v106, 0.2
    %v111 = vsel %vm109, %v106, %v110
    %v112 = vld [vmem:[#allocation2 + $0x20] sm:$0xff]
    %v113 = vld [vmem:[#allocation2 + $0x28] sm:$0xff]
    %v114 = vld [vmem:[#allocation2 + $0x30] sm:$0xff]
    %v115 = vld [vmem:[#allocation2 + $0x38] sm:$0xff]
    %v116 = vld [vmem:[#allocation2 + $0x40] sm:$0xff]
    %v117 = vld [vmem:[#allocation2 + $0x48] sm:$0xff]
    %v118 = vld [vmem:[#allocation2 + $0x50] sm:$0xff]
    %v119 = vld [vmem:[#allocation2 + $0x58] sm:$0xff]
    %v120 = vld [vmem:[#allocation2 + $0x60] sm:$0xff]
    %v121 = vld [vmem:[#allocation2 + $0x68] sm:$0xff]
    %v122 = vld [vmem:[#allocation2 + $0x70] sm:$0xff]
    %v123 = vld [vmem:[#allocation2 + $0x78] sm:$0xff]
    %v124 = vld [vmem:[#allocation2 + $0x80] sm:$0xff]
    %v125 = vld [vmem:[#allocation2 + $0x88] sm:$0xff]
    %v126 = vld [vmem:[#allocation2 + $0x90] sm:$0xff]
    %v127 = vld [vmem:[#allocation2 + $0x98] sm:$0xff]
    %v128 = vld [vmem:[#allocation2 + $0xa0] sm:$0x1]
    %v129 = vlaneseq
    %v130 = vshrl.u32 %v129, 7
    %v131 = vsub.s32 0, %v130
    %v132 = vrot.slane %v128, %v131
    %133 = vmatprep.subr.mxu0 0.0
    %134 = vmatpush1.msra.mxu0 %v112
    %135 = vmatprep.subr.mxu0 0.0
    %136 = vmatpush1.msra.mxu0 %v113
    %137 = vmatprep.subr.mxu0 0.0
    %138 = vmatpush1.msra.mxu0 %v114
    %139 = vmatprep.subr.mxu0 0.0
    %140 = vmatpush1.msra.mxu0 %v115
    %141 = vmatprep.subr.mxu0 0.0
    %142 = vmatpush1.msra.mxu0 %v116
    %143 = vmatprep.subr.mxu0 0.0
    %144 = vmatpush1.msra.mxu0 %v117
    %145 = vmatprep.subr.mxu0 0.0
    %146 = vmatpush1.msra.mxu0 %v118
    %147 = vmatprep.subr.mxu0 0.0
    %148 = vmatpush1.msra.mxu0 %v119
    %149 = vmatprep.subr.mxu0 0.0
    %150 = vmatpush1.msra.mxu0 %v120
    %151 = vmatprep.subr.mxu0 0.0
    %152 = vmatpush1.msra.mxu0 %v121
    %153 = vmatprep.subr.mxu0 0.0
    %154 = vmatpush1.msra.mxu0 %v122
    %155 = vmatprep.subr.mxu0 0.0
    %156 = vmatpush1.msra.mxu0 %v123
    %157 = vmatprep.subr.mxu0 0.0
    %158 = vmatpush1.msra.mxu0 %v124
    %159 = vmatprep.subr.mxu0 0.0
    %160 = vmatpush1.msra.mxu0 %v125
    %161 = vmatprep.subr.mxu0 0.0
    %162 = vmatpush1.msra.mxu0 %v126
    %163 = vmatprep.subr.mxu0 0.0
    %164 = vmatpush1.msra.mxu0 %v127
    %165 = vmatprep.subr.mxu0 0.0
    %166 = vmatpush1.msra.mxu0 0.0
    %167 = vmatprep.subr.mxu0 0.0
    %168 = vmatpush1.msra.mxu0 0.0
    %169 = vmatprep.subr.mxu0 0.0
    %170 = vmatpush1.msra.mxu0 0.0
    %171 = vmatprep.subr.mxu0 0.0
    %172 = vmatpush1.msra.mxu0 0.0
    %173 = vmatprep.subr.mxu0 0.0
    %174 = vmatpush1.msra.mxu0 0.0
    %175 = vmatprep.subr.mxu0 0.0
    %176 = vmatpush1.msra.mxu0 0.0
    %177 = vmatprep.subr.mxu0 0.0
    %178 = vmatpush1.msra.mxu0 0.0
    %179 = vmatprep.subr.mxu0 0.0
    %180 = vmatpush1.msra.mxu0 0.0
    %181 = vmatprep.subr.mxu0 0.0
    %182 = vmatpush1.msra.mxu0 0.0
    %183 = vmatprep.subr.mxu0 0.0
    %184 = vmatpush1.msra.mxu0 0.0
    %185 = vmatprep.subr.mxu0 0.0
    %186 = vmatpush1.msra.mxu0 0.0
    %187 = vmatprep.subr.mxu0 0.0
    %188 = vmatpush1.msra.mxu0 0.0
    %189 = vmatprep.subr.mxu0 0.0
    %190 = vmatpush1.msra.mxu0 0.0
    %191 = vmatprep.subr.mxu0 0.0
    %192 = vmatpush1.msra.mxu0 0.0
    %193 = vmatprep.subr.mxu0 0.0
    %194 = vmatpush1.msra.mxu0 0.0
    %195 = vmatprep.subr.mxu0 0.0
    %196 = vmatpush1.msra.mxu0 0.0
    %197 = vmatprep.mubr.f32.mxu0 0.0
    %198 = vmatmul.mubr.f32.gmra.mrb[0].mxu0 %v111
    %v199 = vpop.f32.mrb[0].mxu0
    %v200 = vadd.f32 %v132, %v199
    %v201 = vpop.f32.mrb[0].mxu0
    %202 = vdwg.mxu0
    %vm203 = vcmp.gt.f32.partialorder %v200, 0.0
    %v204 = vmul.f32 %v200, 0.2
    %v205 = vsel %vm203, %v200, %v204
    %v206 = vld [vmem:[#allocation2 + $0xa8] sm:$0xff]
    %v207 = vld [vmem:[#allocation2 + $0xb0] sm:$0xff]
    %v208 = vld [vmem:[#allocation2 + $0xb8] sm:$0xff]
    %v209 = vld [vmem:[#allocation2 + $0xc0] sm:$0xff]
    %v210 = vld [vmem:[#allocation2 + $0xc8] sm:$0xff]
    %v211 = vld [vmem:[#allocation2 + $0xd0] sm:$0xff]
    %v212 = vld [vmem:[#allocation2 + $0xd8] sm:$0xff]
    %v213 = vld [vmem:[#allocation2 + $0xe0] sm:$0xff]
    %v214 = vld [vmem:[#allocation2 + $0xe8] sm:$0xff]
    %v215 = vld [vmem:[#allocation2 + $0xf0] sm:$0xff]
    %v216 = vld [vmem:[#allocation2 + $0xf8] sm:$0xff]
    %v217 = vld [vmem:[#allocation2 + $0x100] sm:$0xff]
    %v218 = vld [vmem:[#allocation2 + $0x108] sm:$0xff]
    %v219 = vld [vmem:[#allocation2 + $0x110] sm:$0xff]
    %v220 = vld [vmem:[#allocation2 + $0x118] sm:$0xff]
    %v221 = vld [vmem:[#allocation2 + $0x120] sm:$0xff]
    %v222 = vld [vmem:[#allocation2 + $0x128] sm:$0x1]
    %v223 = vlaneseq
    %v224 = vshrl.u32 %v223, 7
    %v225 = vsub.s32 0, %v224
    %v226 = vrot.slane %v222, %v225
    %227 = vmatprep.subr.mxu0 0.0
    %228 = vmatpush1.msra.mxu0 %v206
    %229 = vmatprep.subr.mxu0 0.0
    %230 = vmatpush1.msra.mxu0 %v207
    %231 = vmatprep.subr.mxu0 0.0
    %232 = vmatpush1.msra.mxu0 %v208
    %233 = vmatprep.subr.mxu0 0.0
    %234 = vmatpush1.msra.mxu0 %v209
    %235 = vmatprep.subr.mxu0 0.0
    %236 = vmatpush1.msra.mxu0 %v210
    %237 = vmatprep.subr.mxu0 0.0
    %238 = vmatpush1.msra.mxu0 %v211
    %239 = vmatprep.subr.mxu0 0.0
    %240 = vmatpush1.msra.mxu0 %v212
    %241 = vmatprep.subr.mxu0 0.0
    %242 = vmatpush1.msra.mxu0 %v213
    %243 = vmatprep.subr.mxu0 0.0
    %244 = vmatpush1.msra.mxu0 %v214
    %245 = vmatprep.subr.mxu0 0.0
    %246 = vmatpush1.msra.mxu0 %v215
    %247 = vmatprep.subr.mxu0 0.0
    %248 = vmatpush1.msra.mxu0 %v216
    %249 = vmatprep.subr.mxu0 0.0
    %250 = vmatpush1.msra.mxu0 %v217
    %251 = vmatprep.subr.mxu0 0.0
    %252 = vmatpush1.msra.mxu0 %v218
    %253 = vmatprep.subr.mxu0 0.0
    %254 = vmatpush1.msra.mxu0 %v219
    %255 = vmatprep.subr.mxu0 0.0
    %256 = vmatpush1.msra.mxu0 %v220
    %257 = vmatprep.subr.mxu0 0.0
    %258 = vmatpush1.msra.mxu0 %v221
    %259 = vmatprep.subr.mxu0 0.0
    %260 = vmatpush1.msra.mxu0 0.0
    %261 = vmatprep.subr.mxu0 0.0
    %262 = vmatpush1.msra.mxu0 0.0
    %263 = vmatprep.subr.mxu0 0.0
    %264 = vmatpush1.msra.mxu0 0.0
    %265 = vmatprep.subr.mxu0 0.0
    %266 = vmatpush1.msra.mxu0 0.0
    %267 = vmatprep.subr.mxu0 0.0
    %268 = vmatpush1.msra.mxu0 0.0
    %269 = vmatprep.subr.mxu0 0.0
    %270 = vmatpush1.msra.mxu0 0.0
    %271 = vmatprep.subr.mxu0 0.0
    %272 = vmatpush1.msra.mxu0 0.0
    %273 = vmatprep.subr.mxu0 0.0
    %274 = vmatpush1.msra.mxu0 0.0
    %275 = vmatprep.subr.mxu0 0.0
    %276 = vmatpush1.msra.mxu0 0.0
    %277 = vmatprep.subr.mxu0 0.0
    %278 = vmatpush1.msra.mxu0 0.0
    %279 = vmatprep.subr.mxu0 0.0
    %280 = vmatpush1.msra.mxu0 0.0
    %281 = vmatprep.subr.mxu0 0.0
    %282 = vmatpush1.msra.mxu0 0.0
    %283 = vmatprep.subr.mxu0 0.0
    %284 = vmatpush1.msra.mxu0 0.0
    %285 = vmatprep.subr.mxu0 0.0
    %286 = vmatpush1.msra.mxu0 0.0
    %287 = vmatprep.subr.mxu0 0.0
    %288 = vmatpush1.msra.mxu0 0.0
    %289 = vmatprep.subr.mxu0 0.0
    %290 = vmatpush1.msra.mxu0 0.0
    %291 = vmatprep.mubr.f32.mxu0 0.0
    %292 = vmatmul.mubr.f32.gmra.mrb[0].mxu0 %v205
    %v293 = vpop.f32.mrb[0].mxu0
    %v294 = vadd.f32 %v226, %v293
    %v295 = vpop.f32.mrb[0].mxu0
    %296 = vdwg.mxu0
    %vm297 = vcmp.gt.f32.partialorder %v294, 0.0
    %v298 = vmul.f32 %v294, 0.2
    %v299 = vsel %vm297, %v294, %v298
    %v300 = vld [vmem:[#allocation2 + $0x130] sm:$0xff]
    %v301 = vld [vmem:[#allocation2 + $0x138] sm:$0xff]
    %v302 = vld [vmem:[#allocation2 + $0x140] sm:$0xff]
    %v303 = vld [vmem:[#allocation2 + $0x148] sm:$0xff]
    %v304 = vld [vmem:[#allocation2 + $0x150] sm:$0xff]
    %v305 = vld [vmem:[#allocation2 + $0x158] sm:$0xff]
    %v306 = vld [vmem:[#allocation2 + $0x160] sm:$0xff]
    %v307 = vld [vmem:[#allocation2 + $0x168] sm:$0xff]
    %v308 = vld [vmem:[#allocation2 + $0x170] sm:$0xff]
    %v309 = vld [vmem:[#allocation2 + $0x178] sm:$0xff]
    %v310 = vld [vmem:[#allocation2 + $0x180] sm:$0xff]
    %v311 = vld [vmem:[#allocation2 + $0x188] sm:$0xff]
    %v312 = vld [vmem:[#allocation2 + $0x190] sm:$0xff]
    %v313 = vld [vmem:[#allocation2 + $0x198] sm:$0xff]
    %v314 = vld [vmem:[#allocation2 + $0x1a0] sm:$0xff]
    %v315 = vld [vmem:[#allocation2 + $0x1a8] sm:$0xff]
    %v316 = vld [vmem:[#allocation2 + $0x1b0] sm:$0x1]
    %v317 = vlaneseq
    %v318 = vshrl.u32 %v317, 7
    %v319 = vsub.s32 0, %v318
    %v320 = vrot.slane %v316, %v319
    %321 = vmatprep.subr.mxu0 0.0
    %322 = vmatpush1.msra.mxu0 %v300
    %323 = vmatprep.subr.mxu0 0.0
    %324 = vmatpush1.msra.mxu0 %v301
    %325 = vmatprep.subr.mxu0 0.0
    %326 = vmatpush1.msra.mxu0 %v302
    %327 = vmatprep.subr.mxu0 0.0
    %328 = vmatpush1.msra.mxu0 %v303
    %329 = vmatprep.subr.mxu0 0.0
    %330 = vmatpush1.msra.mxu0 %v304
    %331 = vmatprep.subr.mxu0 0.0
    %332 = vmatpush1.msra.mxu0 %v305
    %333 = vmatprep.subr.mxu0 0.0
    %334 = vmatpush1.msra.mxu0 %v306
    %335 = vmatprep.subr.mxu0 0.0
    %336 = vmatpush1.msra.mxu0 %v307
    %337 = vmatprep.subr.mxu0 0.0
    %338 = vmatpush1.msra.mxu0 %v308
    %339 = vmatprep.subr.mxu0 0.0
    %340 = vmatpush1.msra.mxu0 %v309
    %341 = vmatprep.subr.mxu0 0.0
    %342 = vmatpush1.msra.mxu0 %v310
    %343 = vmatprep.subr.mxu0 0.0
    %344 = vmatpush1.msra.mxu0 %v311
    %345 = vmatprep.subr.mxu0 0.0
    %346 = vmatpush1.msra.mxu0 %v312
    %347 = vmatprep.subr.mxu0 0.0
    %348 = vmatpush1.msra.mxu0 %v313
    %349 = vmatprep.subr.mxu0 0.0
    %350 = vmatpush1.msra.mxu0 %v314
    %351 = vmatprep.subr.mxu0 0.0
    %352 = vmatpush1.msra.mxu0 %v315
    %353 = vmatprep.subr.mxu0 0.0
    %354 = vmatpush1.msra.mxu0 0.0
    %355 = vmatprep.subr.mxu0 0.0
    %356 = vmatpush1.msra.mxu0 0.0
    %357 = vmatprep.subr.mxu0 0.0
    %358 = vmatpush1.msra.mxu0 0.0
    %359 = vmatprep.subr.mxu0 0.0
    %360 = vmatpush1.msra.mxu0 0.0
    %361 = vmatprep.subr.mxu0 0.0
    %362 = vmatpush1.msra.mxu0 0.0
    %363 = vmatprep.subr.mxu0 0.0
    %364 = vmatpush1.msra.mxu0 0.0
    %365 = vmatprep.subr.mxu0 0.0
    %366 = vmatpush1.msra.mxu0 0.0
    %367 = vmatprep.subr.mxu0 0.0
    %368 = vmatpush1.msra.mxu0 0.0
    %369 = vmatprep.subr.mxu0 0.0
    %370 = vmatpush1.msra.mxu0 0.0
    %371 = vmatprep.subr.mxu0 0.0
    %372 = vmatpush1.msra.mxu0 0.0
    %373 = vmatprep.subr.mxu0 0.0
    %374 = vmatpush1.msra.mxu0 0.0
    %375 = vmatprep.subr.mxu0 0.0
    %376 = vmatpush1.msra.mxu0 0.0
    %377 = vmatprep.subr.mxu0 0.0
    %378 = vmatpush1.msra.mxu0 0.0
    %379 = vmatprep.subr.mxu0 0.0
    %380 = vmatpush1.msra.mxu0 0.0
    %381 = vmatprep.subr.mxu0 0.0
    %382 = vmatpush1.msra.mxu0 0.0
    %383 = vmatprep.subr.mxu0 0.0
    %384 = vmatpush1.msra.mxu0 0.0
    %385 = vmatprep.mubr.f32.mxu0 0.0
    %386 = vmatmul.mubr.f32.gmra.mrb[0].mxu0 %v299
    %v387 = vpop.f32.mrb[0].mxu0
    %v388 = vadd.f32 %v320, %v387
    %v389 = vpop.f32.mrb[0].mxu0
    %390 = vdwg.mxu0
    %391 = vst [vmem:[#allocation5] sm:$0x3] %v388
    // Predicated region
    $region14: #{forward.1} parent=1 // pred_check
      _
    $region15: #{forward.1} parent=1 // pred_check_branch
      %393 = sbr.rel (0) target = $region17
    $region16: #{forward.1} parent=1 // pred_region
      %s395 = ssub.s32 32, 32
      %396 = vsyncadd [#allocation4], %s395
      %s398 = sshll.u32 [#allocation5], 4
      %s399 = int_to_ptr.vmem [resolvable:$true] %s398
      %401 = dma.vmem_to_hbm [thread:$0]  %s399, 32, %s2, [#allocation4]
    $region17: #{forward.1} parent=1 // pred_fallthru
      _
    // Predicated region
    $region18: #{forward.1} parent=1 // pred_check
      _
    $region19: #{forward.1} parent=1 // pred_check_branch
      %403 = sbr.rel (0) target = $region21
    $region20: #{forward.1} parent=1 // pred_region
      %404 = dma.done [#allocation4], 32
    $region21: #{forward.1} parent=1 // pred_fallthru
      _
    %405 = vsyncpa [#allocation3], 1
    %406 = vsyncpa [#allocation4], 1

</llo_original>
